<compile_context>
chip_gen: v5e
topology: v5e:2x2
jax: 0.10.0
libtpu: 0.0.40
codegen_flags: <defaults>
</compile_context>

<pallas_src>
from functools import partial

import jax
import jax.numpy as jnp
from jax.experimental import pallas as pl
from jax.experimental.pallas import tpu as pltpu

_OFF_H = 32     # lane offset of h_new inside the output slab
_OUT_W = 128    # slab width = one full vreg lane width (unmasked full store)
_MAX_TB = 512   # batch tile cap (tunable); on v7x with huge B prefer TB <= B//2


def _agent_kernel(
    obs_ref,      # [TB, Din]  bf16   flattened observation
    h_ref,        # [TB, H]    f32    LSTM hidden state (in)
    c_ref,        # [TB, H]    f32    LSTM cell state (in)
    gum_ref,      # [TB, 128]  f32    Gumbel noise (only lanes 0..A-1 used)
    w_enc_ref,    # [Din, H]   bf16
    b_enc_ref,    # [1, H]     f32
    w_ih_ref,     # [H, 4H]    bf16
    w_hh_ref,     # [H, 4H]    bf16
    b_lstm_ref,   # [1, 4H]    f32
    w_head_ref,   # [H, 128]   bf16   cols 0..A-1 actor, col A critic, rest 0
    b_head_ref,   # [1, 128]   f32
    out_ref,      # [TB, 128]  f32    packed output slab
    *,
    n_actions: int,
):
    TB = obs_ref.shape[0]
    Hh = h_ref.shape[-1]
    A = n_actions
    W = out_ref.shape[-1]

    # ---- encoder: Linear + ReLU (bf16 matmul, f32 accumulate) --------------
    x = jnp.dot(obs_ref[...], w_enc_ref[...], preferred_element_type=jnp.float32)
    x = jnp.maximum(x + b_enc_ref[...], 0.0)

    # ---- LSTM cell (PyTorch gate order i, f, g, o); two dots, no concat ----
    gates = (
        jnp.dot(x.astype(jnp.bfloat16), w_ih_ref[...],
                preferred_element_type=jnp.float32)
        + jnp.dot(h_ref[...].astype(jnp.bfloat16), w_hh_ref[...],
                  preferred_element_type=jnp.float32)
        + b_lstm_ref[...]
    )
    i_g = jax.nn.sigmoid(gates[:, 0 * Hh:1 * Hh])
    f_g = jax.nn.sigmoid(gates[:, 1 * Hh:2 * Hh])
    g_g = jnp.tanh(gates[:, 2 * Hh:3 * Hh])
    o_g = jax.nn.sigmoid(gates[:, 3 * Hh:4 * Hh])
    c_new = f_g * c_ref[...] + i_g * g_g
    h_new = o_g * jnp.tanh(c_new)

    # ---- fused actor + critic head, padded to the full 128-lane slab -------
    # head lanes: [0..A-1] = logits, [A] = value, rest 0 (zero weight columns)
    head = (
        jnp.dot(h_new.astype(jnp.bfloat16), w_head_ref[...],
                preferred_element_type=jnp.float32)
        + b_head_ref[...]
    )

    ids = jax.lax.broadcasted_iota(jnp.int32, (TB, W), 1)
    valid = ids < A
    neg = jnp.float32(-1e30)

    # ---- sample_logits(): masked full-width log-softmax + entropy ----------
    logits_m = jnp.where(valid, head, neg)
    m = jnp.max(logits_m, axis=-1, keepdims=True)
    z = logits_m - m
    ez = jnp.exp(z)                          # padded lanes underflow to 0
    denom = jnp.sum(jnp.where(valid, ez, 0.0), axis=-1, keepdims=True)
    lse = jnp.log(denom)
    logp = z - lse                           # log_softmax on valid lanes
    p = ez / denom
    entropy = -jnp.sum(jnp.where(valid, p * logp, 0.0), axis=-1, keepdims=True)

    # ---- Gumbel-max categorical sample (noise streamed in, lane-dense) -----
    noisy = jnp.where(valid, head + gum_ref[...], neg)
    nmax = jnp.max(noisy, axis=-1, keepdims=True)
    action = jnp.min(jnp.where(noisy >= nmax, ids, W), axis=-1, keepdims=True)
    logprob = jnp.sum(jnp.where(ids == action, logp, 0.0),
                      axis=-1, keepdims=True)

    # ---- assemble slab in-register, one full-width store + 2 aligned stores
    # lanes: [0..A-1] logits | [A] value | [A+1] logprob | [A+2] entropy |
    #        [A+3] action | [32..63] h_new | [64..95] c_new | rest 0
    slab = head
    slab = jnp.where(ids == A + 1, logprob, slab)
    slab = jnp.where(ids == A + 2, entropy, slab)
    slab = jnp.where(ids == A + 3, action.astype(jnp.float32), slab)
    out_ref[...] = slab
    out_ref[:, _OFF_H:_OFF_H + Hh] = h_new
    out_ref[:, _OFF_H + Hh:_OFF_H + 2 * Hh] = c_new


@partial(jax.jit, static_argnames=("n_actions",))
def pytorch_agent_forward(obs, state, key, params, *, n_actions):
    """obs: [B, C, H, W] f32 (NCHW). state: (h, c) each [B, hidden]. key: PRNGKey."""
    B = obs.shape[0]
    obs_flat = obs.reshape(B, -1).astype(jnp.bfloat16)   # row-major flatten, bf16 DMA
    h, c = state
    Hh = h.shape[-1]
    Din = obs_flat.shape[-1]
    A = n_actions

    assert A + 4 <= _OFF_H and _OFF_H + 2 * Hh <= _OUT_W

    # Gumbel noise in the wrapper (fused XLA op); lane-dense [B, 128] slab.
    gumbel = jax.random.gumbel(key, (B, _OUT_W), jnp.float32)

    # Batch tile: as large as possible (MXU rows + fewer grid steps). The grid
    # axis is "parallel" so >=2 blocks shard across v7x's two TensorCores.
    TB = B if B <= _MAX_TB else _MAX_TB
    assert B % TB == 0
    grid = (B // TB,)

    grid_spec = pltpu.PrefetchScalarGridSpec(
        num_scalar_prefetch=0,
        grid=grid,
        in_specs=[
            pl.BlockSpec((TB, Din), lambda b: (b, 0)),             # obs (bf16)
            pl.BlockSpec((TB, Hh), lambda b: (b, 0)),              # h
            pl.BlockSpec((TB, Hh), lambda b: (b, 0)),              # c
            pl.BlockSpec((TB, _OUT_W), lambda b: (b, 0)),          # gumbel noise
            pl.BlockSpec((Din, Hh), lambda b: (0, 0)),             # w_enc (resident)
            pl.BlockSpec((1, Hh), lambda b: (0, 0)),               # b_enc
            pl.BlockSpec((Hh, 4 * Hh), lambda b: (0, 0)),          # w_ih
            pl.BlockSpec((Hh, 4 * Hh), lambda b: (0, 0)),          # w_hh
            pl.BlockSpec((1, 4 * Hh), lambda b: (0, 0)),           # b_lstm
            pl.BlockSpec((Hh, _OUT_W), lambda b: (0, 0)),          # w_head (padded)
            pl.BlockSpec((1, _OUT_W), lambda b: (0, 0)),           # b_head (padded)
        ],
        out_specs=pl.BlockSpec((TB, _OUT_W), lambda b: (b, 0)),
    )

    slab = pl.pallas_call(
        partial(_agent_kernel, n_actions=A),
        out_shape=jax.ShapeDtypeStruct((B, _OUT_W), jnp.float32),
        grid_spec=grid_spec,
        compiler_params=pltpu.CompilerParams(
            dimension_semantics=("parallel",)),
    )(
        obs_flat, h, c, gumbel,
        params["w_enc"], params["b_enc"],
        params["w_ih"], params["w_hh"], params["b_lstm"],
        params["w_head"], params["b_head"],
    )

    # unpack the lane-dense slab (cheap XLA slices outside the kernel)
    logits = slab[:, :A]
    value = slab[:, A:A + 1]
    logprob = slab[:, A + 1:A + 2]
    entropy = slab[:, A + 2:A + 3]
    action = slab[:, A + 3:A + 4].astype(jnp.int32)
    h_new = slab[:, _OFF_H:_OFF_H + Hh]
    c_new = slab[:, _OFF_H + Hh:_OFF_H + 2 * Hh]
    # Matches PytorchAgent.forward return: (action, logprob, entropy, critic, hidden)
    return action, logprob, entropy, value, logits, (h_new, c_new)


def init_params(key, d_in, hidden, n_actions):
    ks = jax.random.split(key, 8)

    def unif(k, shape, fan_in):
        bound = 1.0 / jnp.sqrt(jnp.float32(fan_in))
        return jax.random.uniform(k, shape, jnp.float32, -bound, bound)

    w_enc = unif(ks[0], (d_in, hidden), d_in)
    b_enc = unif(ks[1], (1, hidden), d_in)
    w_ih = unif(ks[2], (hidden, 4 * hidden), hidden)
    w_hh = unif(ks[3], (hidden, 4 * hidden), hidden)
    b_lstm = unif(ks[4], (1, 4 * hidden), hidden)
    w_act = unif(ks[5], (hidden, n_actions), hidden)
    b_act = unif(ks[6], (1, n_actions), hidden)
    w_cri = unif(ks[7], (hidden, 1), hidden)
    b_cri = jnp.zeros((1, 1), jnp.float32)

    # head padded to the full 128-lane slab width: actor | critic | zeros
    w_head = jnp.zeros((hidden, _OUT_W), jnp.float32)
    w_head = w_head.at[:, :n_actions].set(w_act)
    w_head = w_head.at[:, n_actions:n_actions + 1].set(w_cri)
    b_head = jnp.zeros((1, _OUT_W), jnp.float32)
    b_head = b_head.at[:, :n_actions].set(b_act)
    b_head = b_head.at[:, n_actions:n_actions + 1].set(b_cri)

    return {
        # matmul weights in bf16 (f32 accumulate in-kernel); biases stay f32
        "w_enc": w_enc.astype(jnp.bfloat16),
        "b_enc": b_enc,
        "w_ih": w_ih.astype(jnp.bfloat16),
        "w_hh": w_hh.astype(jnp.bfloat16),
        "b_lstm": b_lstm,
        "w_head": w_head.astype(jnp.bfloat16),
        "b_head": b_head,
    }


def reference_forward(obs, state, params, n_actions):
    """Pure-JAX reference (same bf16 matmul casting) — no sampling."""
    B = obs.shape[0]
    h, c = state
    Hh = h.shape[-1]
    A = n_actions
    x = obs.reshape(B, -1).astype(jnp.bfloat16)
    enc = jnp.maximum(
        jnp.dot(x, params["w_enc"], preferred_element_type=jnp.float32)
        + params["b_enc"], 0.0)
    gates = (
        jnp.dot(enc.astype(jnp.bfloat16), params["w_ih"],
                preferred_element_type=jnp.float32)
        + jnp.dot(h.astype(jnp.bfloat16), params["w_hh"],
                  preferred_element_type=jnp.float32)
        + params["b_lstm"])
    i = jax.nn.sigmoid(gates[:, :Hh])
    f = jax.nn.sigmoid(gates[:, Hh:2 * Hh])
    g = jnp.tanh(gates[:, 2 * Hh:3 * Hh])
    o = jax.nn.sigmoid(gates[:, 3 * Hh:4 * Hh])
    c_new = f * c + i * g
    h_new = o * jnp.tanh(c_new)
    head = (jnp.dot(h_new.astype(jnp.bfloat16), params["w_head"],
                    preferred_element_type=jnp.float32) + params["b_head"])
    logits = head[:, :A]
    value = head[:, A:A + 1]
    logp = jax.nn.log_softmax(logits, axis=-1)
    entropy = -jnp.sum(jnp.exp(logp) * logp, axis=-1, keepdims=True)
    return logits, value, entropy, logp, h_new, c_new


if __name__ == "__main__":
    B, C, H, W = 8, 4, 8, 8
    HIDDEN = 32
    N_ACTIONS = 16
    D_IN = C * H * W

    key = jax.random.PRNGKey(0)
    k_obs, k_h, k_c, k_p, k_sample = jax.random.split(key, 5)

    obs = jax.random.normal(k_obs, (B, C, H, W), jnp.float32)
    h0 = jax.random.normal(k_h, (B, HIDDEN), jnp.float32) * 0.1
    c0 = jax.random.normal(k_c, (B, HIDDEN), jnp.float32) * 0.1
    params = init_params(k_p, D_IN, HIDDEN, N_ACTIONS)

    action, logprob, entropy, value, logits, (h_new, c_new) = pytorch_agent_forward(
        obs, (h0, c0), k_sample, params, n_actions=N_ACTIONS
    )
    jax.block_until_ready((action, logprob, entropy, value, logits, h_new, c_new))

    # shape / dtype checks
    assert action.shape == (B, 1) and action.dtype == jnp.int32
    assert logits.shape == (B, N_ACTIONS)
    assert value.shape == (B, 1) and entropy.shape == (B, 1) and logprob.shape == (B, 1)
    assert h_new.shape == (B, HIDDEN) and c_new.shape == (B, HIDDEN)

    # correctness vs. pure-JAX reference (sampling excluded: noise is random)
    r_logits, r_value, r_entropy, r_logp, r_h, r_c = reference_forward(
        obs, (h0, c0), params, N_ACTIONS)
    tol = dict(atol=3e-2, rtol=3e-2)
    assert bool(jnp.allclose(logits, r_logits, **tol))
    assert bool(jnp.allclose(value, r_value, **tol))
    assert bool(jnp.allclose(entropy, r_entropy, **tol))
    assert bool(jnp.allclose(h_new, r_h, **tol))
    assert bool(jnp.allclose(c_new, r_c, **tol))

    # sampling sanity: valid action range, logprob matches log_softmax at action,
    # entropy of a softmax over N_ACTIONS lies in [0, log(N_ACTIONS)]
    assert bool(jnp.all((action >= 0) & (action < N_ACTIONS)))
    gathered = jnp.take_along_axis(r_logp, action, axis=-1)
    assert bool(jnp.allclose(logprob, gathered, atol=5e-2))
    assert bool(jnp.all(entropy >= -1e-5)) and bool(
        jnp.all(entropy <= jnp.log(N_ACTIONS) + 1e-4)
    )
    print("KERNEL_OK")
</pallas_src>

<mosaic_0001>
module attributes {stable_mosaic.version = 11 : i64} {
  func.func @_agent_kernel(%arg0: i32, %arg1: memref<8x256xbf16, #tpu.memory_space<vmem>>, %arg2: memref<8x32xf32, #tpu.memory_space<vmem>>, %arg3: memref<8x32xf32, #tpu.memory_space<vmem>>, %arg4: memref<8x128xf32, #tpu.memory_space<vmem>>, %arg5: memref<256x32xbf16, #tpu.memory_space<vmem>>, %arg6: memref<1x32xf32, #tpu.memory_space<vmem>>, %arg7: memref<32x128xbf16, #tpu.memory_space<vmem>>, %arg8: memref<32x128xbf16, #tpu.memory_space<vmem>>, %arg9: memref<1x128xf32, #tpu.memory_space<vmem>>, %arg10: memref<32x128xbf16, #tpu.memory_space<vmem>>, %arg11: memref<1x128xf32, #tpu.memory_space<vmem>>, %arg12: memref<8x128xf32, #tpu.memory_space<vmem>>) attributes {dimension_semantics = [#tpu.dimension_semantics<parallel>], iteration_bounds = array<i64: 1>, scalar_prefetch = 0 : i64, scratch_operands = 0 : i64, tpu.core_type = #tpu.core_type<tc>, window_params = [{transform_indices = @transform_0, window_bounds = array<i64: 8, 256>}, {transform_indices = @transform_1, window_bounds = array<i64: 8, 32>}, {transform_indices = @transform_2, window_bounds = array<i64: 8, 32>}, {transform_indices = @transform_3, window_bounds = array<i64: 8, 128>}, {pipeline_mode = #tpu.pipeline_mode<synchronous>, transform_indices = @transform_4, window_bounds = array<i64: 256, 32>}, {pipeline_mode = #tpu.pipeline_mode<synchronous>, transform_indices = @transform_5, window_bounds = array<i64: 1, 32>}, {pipeline_mode = #tpu.pipeline_mode<synchronous>, transform_indices = @transform_6, window_bounds = array<i64: 32, 128>}, {pipeline_mode = #tpu.pipeline_mode<synchronous>, transform_indices = @transform_7, window_bounds = array<i64: 32, 128>}, {pipeline_mode = #tpu.pipeline_mode<synchronous>, transform_indices = @transform_8, window_bounds = array<i64: 1, 128>}, {pipeline_mode = #tpu.pipeline_mode<synchronous>, transform_indices = @transform_9, window_bounds = array<i64: 32, 128>}, {pipeline_mode = #tpu.pipeline_mode<synchronous>, transform_indices = @transform_10, window_bounds = array<i64: 1, 128>}, {transform_indices = @transform_11, window_bounds = array<i64: 8, 128>}]} {
    %c0 = arith.constant 0 : index
    %c0_0 = arith.constant 0 : index
    %0 = vector.load %arg1[%c0, %c0_0] : memref<8x256xbf16, #tpu.memory_space<vmem>>, vector<8x256xbf16>
    %c0_1 = arith.constant 0 : index
    %c0_2 = arith.constant 0 : index
    %1 = vector.load %arg5[%c0_1, %c0_2] : memref<256x32xbf16, #tpu.memory_space<vmem>>, vector<256x32xbf16>
    %cst = arith.constant dense<0.000000e+00> : vector<8x32xf32>
    %2 = tpu.matmul %0, %1, %cst {dimension_numbers = #tpu.dot_dimension_numbers<[1], [0], [0], [1], [0, 0, 1, 1], [], []>} : vector<8x256xbf16>, vector<256x32xbf16>, vector<8x32xf32> -> vector<8x32xf32>
    %c0_3 = arith.constant 0 : index
    %c0_4 = arith.constant 0 : index
    %3 = vector.load %arg6[%c0_3, %c0_4] : memref<1x32xf32, #tpu.memory_space<vmem>>, vector<1x32xf32>
    %4 = vector.broadcast %3 : vector<1x32xf32> to vector<8x32xf32>
    %5 = arith.addf %2, %4 : vector<8x32xf32>
    %cst_5 = arith.constant 0.000000e+00 : f32
    %6 = vector.broadcast %cst_5 : f32 to vector<8x32xf32>
    %7 = arith.maximumf %5, %6 : vector<8x32xf32>
    %8 = arith.truncf %7 : vector<8x32xf32> to vector<8x32xbf16>
    %c0_6 = arith.constant 0 : index
    %c0_7 = arith.constant 0 : index
    %9 = vector.load %arg7[%c0_6, %c0_7] : memref<32x128xbf16, #tpu.memory_space<vmem>>, vector<32x128xbf16>
    %cst_8 = arith.constant dense<0.000000e+00> : vector<8x128xf32>
    %10 = tpu.matmul %8, %9, %cst_8 {dimension_numbers = #tpu.dot_dimension_numbers<[1], [0], [0], [1], [0, 0, 1, 1], [], []>} : vector<8x32xbf16>, vector<32x128xbf16>, vector<8x128xf32> -> vector<8x128xf32>
    %c0_9 = arith.constant 0 : index
    %c0_10 = arith.constant 0 : index
    %11 = vector.load %arg2[%c0_9, %c0_10] : memref<8x32xf32, #tpu.memory_space<vmem>>, vector<8x32xf32>
    %12 = arith.truncf %11 : vector<8x32xf32> to vector<8x32xbf16>
    %c0_11 = arith.constant 0 : index
    %c0_12 = arith.constant 0 : index
    %13 = vector.load %arg8[%c0_11, %c0_12] : memref<32x128xbf16, #tpu.memory_space<vmem>>, vector<32x128xbf16>
    %cst_13 = arith.constant dense<0.000000e+00> : vector<8x128xf32>
    %14 = tpu.matmul %12, %13, %cst_13 {dimension_numbers = #tpu.dot_dimension_numbers<[1], [0], [0], [1], [0, 0, 1, 1], [], []>} : vector<8x32xbf16>, vector<32x128xbf16>, vector<8x128xf32> -> vector<8x128xf32>
    %15 = arith.addf %10, %14 : vector<8x128xf32>
    %c0_14 = arith.constant 0 : index
    %c0_15 = arith.constant 0 : index
    %16 = vector.load %arg9[%c0_14, %c0_15] : memref<1x128xf32, #tpu.memory_space<vmem>>, vector<1x128xf32>
    %17 = vector.broadcast %16 : vector<1x128xf32> to vector<8x128xf32>
    %18 = arith.addf %15, %17 : vector<8x128xf32>
    %19 = vector.extract_strided_slice %18 {offsets = [0, 0], sizes = [8, 32], strides = [1, 1]} : vector<8x128xf32> to vector<8x32xf32>
    %20 = arith.negf %19 : vector<8x32xf32>
    %21 = math.exp %20 : vector<8x32xf32>
    %cst_16 = arith.constant 1.000000e+00 : f32
    %22 = vector.broadcast %cst_16 : f32 to vector<8x32xf32>
    %23 = arith.addf %22, %21 : vector<8x32xf32>
    %24 = arith.divf %22, %23 : vector<8x32xf32>
    %25 = vector.extract_strided_slice %18 {offsets = [0, 32], sizes = [8, 32], strides = [1, 1]} : vector<8x128xf32> to vector<8x32xf32>
    %26 = arith.negf %25 : vector<8x32xf32>
    %27 = math.exp %26 : vector<8x32xf32>
    %cst_17 = arith.constant 1.000000e+00 : f32
    %28 = vector.broadcast %cst_17 : f32 to vector<8x32xf32>
    %29 = arith.addf %28, %27 : vector<8x32xf32>
    %30 = arith.divf %28, %29 : vector<8x32xf32>
    %31 = vector.extract_strided_slice %18 {offsets = [0, 64], sizes = [8, 32], strides = [1, 1]} : vector<8x128xf32> to vector<8x32xf32>
    %32 = math.tanh %31 : vector<8x32xf32>
    %33 = vector.extract_strided_slice %18 {offsets = [0, 96], sizes = [8, 32], strides = [1, 1]} : vector<8x128xf32> to vector<8x32xf32>
    %34 = arith.negf %33 : vector<8x32xf32>
    %35 = math.exp %34 : vector<8x32xf32>
    %cst_18 = arith.constant 1.000000e+00 : f32
    %36 = vector.broadcast %cst_18 : f32 to vector<8x32xf32>
    %37 = arith.addf %36, %35 : vector<8x32xf32>
    %38 = arith.divf %36, %37 : vector<8x32xf32>
    %c0_19 = arith.constant 0 : index
    %c0_20 = arith.constant 0 : index
    %39 = vector.load %arg3[%c0_19, %c0_20] : memref<8x32xf32, #tpu.memory_space<vmem>>, vector<8x32xf32>
    %40 = arith.mulf %30, %39 : vector<8x32xf32>
    %41 = arith.mulf %24, %32 : vector<8x32xf32>
    %42 = arith.addf %40, %41 : vector<8x32xf32>
    %43 = math.tanh %42 : vector<8x32xf32>
    %44 = arith.mulf %38, %43 : vector<8x32xf32>
    %45 = arith.truncf %44 : vector<8x32xf32> to vector<8x32xbf16>
    %c0_21 = arith.constant 0 : index
    %c0_22 = arith.constant 0 : index
    %46 = vector.load %arg10[%c0_21, %c0_22] : memref<32x128xbf16, #tpu.memory_space<vmem>>, vector<32x128xbf16>
    %cst_23 = arith.constant dense<0.000000e+00> : vector<8x128xf32>
    %47 = tpu.matmul %45, %46, %cst_23 {dimension_numbers = #tpu.dot_dimension_numbers<[1], [0], [0], [1], [0, 0, 1, 1], [], []>} : vector<8x32xbf16>, vector<32x128xbf16>, vector<8x128xf32> -> vector<8x128xf32>
    %c0_24 = arith.constant 0 : index
    %c0_25 = arith.constant 0 : index
    %48 = vector.load %arg11[%c0_24, %c0_25] : memref<1x128xf32, #tpu.memory_space<vmem>>, vector<1x128xf32>
    %49 = vector.broadcast %48 : vector<1x128xf32> to vector<8x128xf32>
    %50 = arith.addf %47, %49 : vector<8x128xf32>
    %51 = tpu.iota {dimensions = array<i32: 1>} : vector<8x128xi32>
    %c16_i32 = arith.constant 16 : i32
    %52 = vector.broadcast %c16_i32 : i32 to vector<8x128xi32>
    %53 = arith.cmpi slt, %51, %52 : vector<8x128xi32>
    %cst_26 = arith.constant -1.000000e+30 : f32
    %54 = vector.broadcast %cst_26 : f32 to vector<8x128xf32>
    %55 = arith.select %53, %50, %54 : vector<8x128xi1>, vector<8x128xf32>
    %cst_27 = arith.constant dense<0xFF800000> : vector<8xf32>
    %56 = vector.multi_reduction <maximumf>, %55, %cst_27 [1] : vector<8x128xf32> to vector<8xf32>
    %57 = vector.shape_cast %56 : vector<8xf32> to vector<8x1xf32>
    %58 = vector.broadcast %57 : vector<8x1xf32> to vector<8x128xf32>
    %59 = arith.subf %55, %58 : vector<8x128xf32>
    %60 = math.exp %59 : vector<8x128xf32>
    %cst_28 = arith.constant 0.000000e+00 : f32
    %61 = vector.broadcast %cst_28 : f32 to vector<8x128xf32>
    %62 = arith.select %53, %60, %61 : vector<8x128xi1>, vector<8x128xf32>
    %cst_29 = arith.constant dense<0.000000e+00> : vector<8xf32>
    %63 = vector.multi_reduction <add>, %62, %cst_29 [1] : vector<8x128xf32> to vector<8xf32>
    %64 = vector.shape_cast %63 : vector<8xf32> to vector<8x1xf32>
    %65 = math.log %64 : vector<8x1xf32>
    %66 = vector.broadcast %65 : vector<8x1xf32> to vector<8x128xf32>
    %67 = arith.subf %59, %66 : vector<8x128xf32>
    %68 = vector.broadcast %64 : vector<8x1xf32> to vector<8x128xf32>
    %69 = arith.divf %60, %68 : vector<8x128xf32>
    %70 = arith.mulf %69, %67 : vector<8x128xf32>
    %cst_30 = arith.constant 0.000000e+00 : f32
    %71 = vector.broadcast %cst_30 : f32 to vector<8x128xf32>
    %72 = arith.select %53, %70, %71 : vector<8x128xi1>, vector<8x128xf32>
    %cst_31 = arith.constant dense<0.000000e+00> : vector<8xf32>
    %73 = vector.multi_reduction <add>, %72, %cst_31 [1] : vector<8x128xf32> to vector<8xf32>
    %74 = vector.shape_cast %73 : vector<8xf32> to vector<8x1xf32>
    %cst_32 = arith.constant 0.000000e+00 : f32
    %75 = vector.broadcast %cst_32 : f32 to vector<8x1xf32>
    %76 = arith.subf %75, %74 : vector<8x1xf32>
    %c0_33 = arith.constant 0 : index
    %c0_34 = arith.constant 0 : index
    %77 = vector.load %arg4[%c0_33, %c0_34] : memref<8x128xf32, #tpu.memory_space<vmem>>, vector<8x128xf32>
    %78 = arith.addf %50, %77 : vector<8x128xf32>
    %cst_35 = arith.constant -1.000000e+30 : f32
    %79 = vector.broadcast %cst_35 : f32 to vector<8x128xf32>
    %80 = arith.select %53, %78, %79 : vector<8x128xi1>, vector<8x128xf32>
    %cst_36 = arith.constant dense<0xFF800000> : vector<8xf32>
    %81 = vector.multi_reduction <maximumf>, %80, %cst_36 [1] : vector<8x128xf32> to vector<8xf32>
    %82 = vector.shape_cast %81 : vector<8xf32> to vector<8x1xf32>
    %83 = vector.broadcast %82 : vector<8x1xf32> to vector<8x128xf32>
    %84 = arith.cmpf oge, %80, %83 : vector<8x128xf32>
    %c128_i32 = arith.constant 128 : i32
    %85 = vector.broadcast %c128_i32 : i32 to vector<8x128xi32>
    %86 = arith.select %84, %51, %85 : vector<8x128xi1>, vector<8x128xi32>
    %cst_37 = arith.constant dense<2147483647> : vector<8xi32>
    %87 = vector.multi_reduction <minsi>, %86, %cst_37 [1] : vector<8x128xi32> to vector<8xi32>
    %88 = vector.shape_cast %87 : vector<8xi32> to vector<8x1xi32>
    %89 = vector.broadcast %88 : vector<8x1xi32> to vector<8x128xi32>
    %90 = arith.cmpi eq, %51, %89 : vector<8x128xi32>
    %cst_38 = arith.constant 0.000000e+00 : f32
    %91 = vector.broadcast %cst_38 : f32 to vector<8x128xf32>
    %92 = arith.select %90, %67, %91 : vector<8x128xi1>, vector<8x128xf32>
    %cst_39 = arith.constant dense<0.000000e+00> : vector<8xf32>
    %93 = vector.multi_reduction <add>, %92, %cst_39 [1] : vector<8x128xf32> to vector<8xf32>
    %94 = vector.shape_cast %93 : vector<8xf32> to vector<8x1xf32>
    %c17_i32 = arith.constant 17 : i32
    %95 = vector.broadcast %c17_i32 : i32 to vector<8x128xi32>
    %96 = arith.cmpi eq, %51, %95 : vector<8x128xi32>
    %97 = vector.shape_cast %94 : vector<8x1xf32> to vector<8x1xf32>
    %98 = vector.broadcast %97 : vector<8x1xf32> to vector<8x128xf32>
    %99 = arith.select %96, %98, %50 : vector<8x128xi1>, vector<8x128xf32>
    %c18_i32 = arith.constant 18 : i32
    %100 = vector.broadcast %c18_i32 : i32 to vector<8x128xi32>
    %101 = arith.cmpi eq, %51, %100 : vector<8x128xi32>
    %102 = vector.shape_cast %76 : vector<8x1xf32> to vector<8x1xf32>
    %103 = vector.broadcast %102 : vector<8x1xf32> to vector<8x128xf32>
    %104 = arith.select %101, %103, %99 : vector<8x128xi1>, vector<8x128xf32>
    %c19_i32 = arith.constant 19 : i32
    %105 = vector.broadcast %c19_i32 : i32 to vector<8x128xi32>
    %106 = arith.cmpi eq, %51, %105 : vector<8x128xi32>
    %107 = arith.sitofp %88 : vector<8x1xi32> to vector<8x1xf32>
    %108 = vector.shape_cast %107 : vector<8x1xf32> to vector<8x1xf32>
    %109 = vector.broadcast %108 : vector<8x1xf32> to vector<8x128xf32>
    %110 = arith.select %106, %109, %104 : vector<8x128xi1>, vector<8x128xf32>
    %c0_40 = arith.constant 0 : index
    %c0_41 = arith.constant 0 : index
    %111 = vector.load %arg12[%c0_40, %c0_41] : memref<8x128xf32, #tpu.memory_space<vmem>>, vector<8x128xf32>
    tpu.vector_store %arg12[%c0_40, %c0_41], %110 {strides = array<i32>} : memref<8x128xf32, #tpu.memory_space<vmem>>, vector<8x128xf32>,
    %c0_42 = arith.constant 0 : index
    %c32 = arith.constant 32 : index
    %112 = vector.load %arg12[%c0_42, %c32] : memref<8x128xf32, #tpu.memory_space<vmem>>, vector<8x32xf32>
    tpu.vector_store %arg12[%c0_42, %c32], %44 {strides = array<i32>} : memref<8x128xf32, #tpu.memory_space<vmem>>, vector<8x32xf32>,
    %c0_43 = arith.constant 0 : index
    %c64 = arith.constant 64 : index
    %113 = vector.load %arg12[%c0_43, %c64] : memref<8x128xf32, #tpu.memory_space<vmem>>, vector<8x32xf32>
    tpu.vector_store %arg12[%c0_43, %c64], %42 {strides = array<i32>} : memref<8x128xf32, #tpu.memory_space<vmem>>, vector<8x32xf32>,
    return
  }
  func.func @transform_0(%arg0: i32) -> (i32, i32) {
    %c0_i32 = arith.constant 0 : i32
    %c0_i32_0 = arith.constant 0 : i32
    return %arg0, %c0_i32 : i32, i32
  }
  func.func @transform_1(%arg0: i32) -> (i32, i32) {
    %c0_i32 = arith.constant 0 : i32
    %c0_i32_0 = arith.constant 0 : i32
    return %arg0, %c0_i32 : i32, i32
  }
  func.func @transform_2(%arg0: i32) -> (i32, i32) {
    %c0_i32 = arith.constant 0 : i32
    %c0_i32_0 = arith.constant 0 : i32
    return %arg0, %c0_i32 : i32, i32
  }
  func.func @transform_3(%arg0: i32) -> (i32, i32) {
    %c0_i32 = arith.constant 0 : i32
    %c0_i32_0 = arith.constant 0 : i32
    return %arg0, %c0_i32 : i32, i32
  }
  func.func @transform_4(%arg0: i32) -> (i32, i32) {
    %c0_i32 = arith.constant 0 : i32
    %c0_i32_0 = arith.constant 0 : i32
    %c0_i32_1 = arith.constant 0 : i32
    return %c0_i32, %c0_i32_0 : i32, i32
  }
  func.func @transform_5(%arg0: i32) -> (i32, i32) {
    %c0_i32 = arith.constant 0 : i32
    %c0_i32_0 = arith.constant 0 : i32
    %c0_i32_1 = arith.constant 0 : i32
    return %c0_i32, %c0_i32_0 : i32, i32
  }
  func.func @transform_6(%arg0: i32) -> (i32, i32) {
    %c0_i32 = arith.constant 0 : i32
    %c0_i32_0 = arith.constant 0 : i32
    %c0_i32_1 = arith.constant 0 : i32
    return %c0_i32, %c0_i32_0 : i32, i32
  }
  func.func @transform_7(%arg0: i32) -> (i32, i32) {
    %c0_i32 = arith.constant 0 : i32
    %c0_i32_0 = arith.constant 0 : i32
    %c0_i32_1 = arith.constant 0 : i32
    return %c0_i32, %c0_i32_0 : i32, i32
  }
  func.func @transform_8(%arg0: i32) -> (i32, i32) {
    %c0_i32 = arith.constant 0 : i32
    %c0_i32_0 = arith.constant 0 : i32
    %c0_i32_1 = arith.constant 0 : i32
    return %c0_i32, %c0_i32_0 : i32, i32
  }
  func.func @transform_9(%arg0: i32) -> (i32, i32) {
    %c0_i32 = arith.constant 0 : i32
    %c0_i32_0 = arith.constant 0 : i32
    %c0_i32_1 = arith.constant 0 : i32
    return %c0_i32, %c0_i32_0 : i32, i32
  }
  func.func @transform_10(%arg0: i32) -> (i32, i32) {
    %c0_i32 = arith.constant 0 : i32
    %c0_i32_0 = arith.constant 0 : i32
    %c0_i32_1 = arith.constant 0 : i32
    return %c0_i32, %c0_i32_0 : i32, i32
  }
  func.func @transform_11(%arg0: i32) -> (i32, i32) {
    %c0_i32 = arith.constant 0 : i32
    %c0_i32_0 = arith.constant 0 : i32
    return %arg0, %c0_i32 : i32, i32
  }
}

</mosaic_0001>

<llo_original>
// kernel: pytorch_agent_forward.1
$region0: #{pytorch_agent_forward.1}
  #allocation0 [shape = 'u32[]', space=smem, size = 0x4, offset = 0x4, fixed_abs, tag = 'smem constant byte address 0x4 - core index']
  #allocation1 [shape = 'u32[72,128]{1,0:T(1,128)}', space=vmem, size = 0x9000, scoped, tag = 'internal scratch']
  %s0 = inlined_call_operand.vmem [shape: bf16[8,256], index: 0, kind: input, shape index: {}]
  %s1 = inlined_call_operand.vmem [shape: f32[8,32], index: 1, kind: input, shape index: {}]
  %s2 = inlined_call_operand.vmem [shape: f32[8,32], index: 2, kind: input, shape index: {}]
  %s3 = inlined_call_operand.vmem [shape: f32[8,128], index: 3, kind: input, shape index: {}]
  %s4 = inlined_call_operand.vmem [shape: bf16[256,32], index: 4, kind: input, shape index: {}]
  %s5 = inlined_call_operand.vmem [shape: f32[1,32], index: 5, kind: input, shape index: {}]
  %s6 = inlined_call_operand.vmem [shape: bf16[32,128], index: 6, kind: input, shape index: {}]
  %s7 = inlined_call_operand.vmem [shape: bf16[32,128], index: 7, kind: input, shape index: {}]
  %s8 = inlined_call_operand.vmem [shape: f32[1,128], index: 8, kind: input, shape index: {}]
  %s9 = inlined_call_operand.vmem [shape: bf16[32,128], index: 9, kind: input, shape index: {}]
  %s10 = inlined_call_operand.vmem [shape: f32[1,128], index: 10, kind: input, shape index: {}]
  %s11 = inlined_call_operand.vmem [shape: f32[8,128], index: 11, kind: output, shape index: {}]
  %s12 = sld [smem:[#allocation0]]
  $region54: #{pytorch_agent_forward.1} parent=0
    _
  %s14 = ssub.s32 1, %s12
  %s15 = scalar_select 0, %s14, %s12
  // Predicated region
  $region2: #{pytorch_agent_forward.1} parent=0 // pred_check
    _
  $region3: #{pytorch_agent_forward.1} parent=0 // pred_check_branch
    %17 = sbr.rel (0) target = $region5
  $region4: #{pytorch_agent_forward.1} parent=0 // pred_region
    _
  $region5: #{pytorch_agent_forward.1} parent=0 // pred_fallthru
    _
  // Predicated region
  $region6: #{pytorch_agent_forward.1} parent=0 // pred_check
    _
  $region7: #{pytorch_agent_forward.1} parent=0 // pred_check_branch
    %19 = sbr.rel (0) target = $region9
  $region8: #{pytorch_agent_forward.1} parent=0 // pred_region
    _
  $region9: #{pytorch_agent_forward.1} parent=0 // pred_fallthru
    _
  // Predicated region
  $region10: #{pytorch_agent_forward.1} parent=0 // pred_check
    _
  $region11: #{pytorch_agent_forward.1} parent=0 // pred_check_branch
    %21 = sbr.rel (0) target = $region13
  $region12: #{pytorch_agent_forward.1} parent=0 // pred_region
    _
  $region13: #{pytorch_agent_forward.1} parent=0 // pred_fallthru
    _
  // Predicated region
  $region14: #{pytorch_agent_forward.1} parent=0 // pred_check
    _
  $region15: #{pytorch_agent_forward.1} parent=0 // pred_check_branch
    %23 = sbr.rel (0) target = $region17
  $region16: #{pytorch_agent_forward.1} parent=0 // pred_region
    _
  $region17: #{pytorch_agent_forward.1} parent=0 // pred_fallthru
    _
  // Predicated region
  $region18: #{pytorch_agent_forward.1} parent=0 // pred_check
    _
  $region19: #{pytorch_agent_forward.1} parent=0 // pred_check_branch
    %25 = sbr.rel (0) target = $region21
  $region20: #{pytorch_agent_forward.1} parent=0 // pred_region
    _
  $region21: #{pytorch_agent_forward.1} parent=0 // pred_fallthru
    _
  // Predicated region
  $region22: #{pytorch_agent_forward.1} parent=0 // pred_check
    _
  $region23: #{pytorch_agent_forward.1} parent=0 // pred_check_branch
    %27 = sbr.rel (0) target = $region25
  $region24: #{pytorch_agent_forward.1} parent=0 // pred_region
    _
  $region25: #{pytorch_agent_forward.1} parent=0 // pred_fallthru
    _
  // Predicated region
  $region26: #{pytorch_agent_forward.1} parent=0 // pred_check
    _
  $region27: #{pytorch_agent_forward.1} parent=0 // pred_check_branch
    %29 = sbr.rel (0) target = $region29
  $region28: #{pytorch_agent_forward.1} parent=0 // pred_region
    _
  $region29: #{pytorch_agent_forward.1} parent=0 // pred_fallthru
    _
  // Predicated region
  $region30: #{pytorch_agent_forward.1} parent=0 // pred_check
    _
  $region31: #{pytorch_agent_forward.1} parent=0 // pred_check_branch
    %31 = sbr.rel (0) target = $region33
  $region32: #{pytorch_agent_forward.1} parent=0 // pred_region
    _
  $region33: #{pytorch_agent_forward.1} parent=0 // pred_fallthru
    _
  // Predicated region
  $region34: #{pytorch_agent_forward.1} parent=0 // pred_check
    _
  $region35: #{pytorch_agent_forward.1} parent=0 // pred_check_branch
    %33 = sbr.rel (0) target = $region37
  $region36: #{pytorch_agent_forward.1} parent=0 // pred_region
    _
  $region37: #{pytorch_agent_forward.1} parent=0 // pred_fallthru
    _
  // Predicated region
  $region38: #{pytorch_agent_forward.1} parent=0 // pred_check
    _
  $region39: #{pytorch_agent_forward.1} parent=0 // pred_check_branch
    %35 = sbr.rel (0) target = $region41
  $region40: #{pytorch_agent_forward.1} parent=0 // pred_region
    _
  $region41: #{pytorch_agent_forward.1} parent=0 // pred_fallthru
    _
  // Predicated region
  $region42: #{pytorch_agent_forward.1} parent=0 // pred_check
    _
  $region43: #{pytorch_agent_forward.1} parent=0 // pred_check_branch
    %37 = sbr.rel (0) target = $region45
  $region44: #{pytorch_agent_forward.1} parent=0 // pred_region
    _
  $region45: #{pytorch_agent_forward.1} parent=0 // pred_fallthru
    _
  %v39 = vld [vmem:[%s0] sm:$0xff]
  %v40 = vld [vmem:[%s4] sm:$0xf]
  %v41 = vld [vmem:[%s4 + $0x4] sm:$0xf]
  %v42 = vld [vmem:[%s4 + $0x8] sm:$0xf]
  %v43 = vld [vmem:[%s4 + $0xc] sm:$0xf]
  %v44 = vld [vmem:[%s4 + $0x10] sm:$0xf]
  %v45 = vld [vmem:[%s4 + $0x14] sm:$0xf]
  %v46 = vld [vmem:[%s4 + $0x18] sm:$0xf]
  %v47 = vld [vmem:[%s4 + $0x1c] sm:$0xf]
  %v48 = vld [vmem:[%s4 + $0x20] sm:$0xf]
  %v49 = vld [vmem:[%s4 + $0x24] sm:$0xf]
  %v50 = vld [vmem:[%s4 + $0x28] sm:$0xf]
  %v51 = vld [vmem:[%s4 + $0x2c] sm:$0xf]
  %v52 = vld [vmem:[%s4 + $0x30] sm:$0xf]
  %v53 = vld [vmem:[%s4 + $0x34] sm:$0xf]
  %v54 = vld [vmem:[%s4 + $0x38] sm:$0xf]
  %v55 = vld [vmem:[%s4 + $0x3c] sm:$0xf]
  %v56 = vld [vmem:[%s4 + $0x40] sm:$0xf]
  %v57 = vld [vmem:[%s4 + $0x44] sm:$0xf]
  %v58 = vld [vmem:[%s4 + $0x48] sm:$0xf]
  %v59 = vld [vmem:[%s4 + $0x4c] sm:$0xf]
  %v60 = vld [vmem:[%s4 + $0x50] sm:$0xf]
  %v61 = vld [vmem:[%s4 + $0x54] sm:$0xf]
  %v62 = vld [vmem:[%s4 + $0x58] sm:$0xf]
  %v63 = vld [vmem:[%s4 + $0x5c] sm:$0xf]
  %v64 = vld [vmem:[%s4 + $0x60] sm:$0xf]
  %v65 = vld [vmem:[%s4 + $0x64] sm:$0xf]
  %v66 = vld [vmem:[%s4 + $0x68] sm:$0xf]
  %v67 = vld [vmem:[%s4 + $0x6c] sm:$0xf]
  %v68 = vld [vmem:[%s4 + $0x70] sm:$0xf]
  %v69 = vld [vmem:[%s4 + $0x74] sm:$0xf]
  %v70 = vld [vmem:[%s4 + $0x78] sm:$0xf]
  %v71 = vld [vmem:[%s4 + $0x7c] sm:$0xf]
  %v72 = vld [vmem:[%s5] sm:$0x1]
  %v74 = vperm.slane %v72, 0
  %v77 = vunpack.c.l.b16 %v39
  %v78 = vunpack.c.h.b16 %v39
  %v79 = vpack.c.b16 %v77, %v77
  %v80 = vpack.c.b16 %v78, %v78
  %v115 = vunpack.c.l.b16 %v40
  %v116 = vunpack.c.l.b16 %v41
  %v117 = vunpack.c.l.b16 %v42
  %v118 = vunpack.c.l.b16 %v43
  %v119 = vunpack.c.l.b16 %v44
  %v120 = vunpack.c.l.b16 %v45
  %v121 = vunpack.c.l.b16 %v46
  %v122 = vunpack.c.l.b16 %v47
  %v123 = vunpack.c.l.b16 %v48
  %v124 = vunpack.c.l.b16 %v49
  %v125 = vunpack.c.l.b16 %v50
  %v126 = vunpack.c.l.b16 %v51
  %v127 = vunpack.c.l.b16 %v52
  %v128 = vunpack.c.l.b16 %v53
  %v129 = vunpack.c.l.b16 %v54
  %v130 = vunpack.c.l.b16 %v55
  %v131 = vunpack.c.l.b16 %v56
  %v132 = vunpack.c.l.b16 %v57
  %v133 = vunpack.c.l.b16 %v58
  %v134 = vunpack.c.l.b16 %v59
  %v135 = vunpack.c.l.b16 %v60
  %v136 = vunpack.c.l.b16 %v61
  %v137 = vunpack.c.l.b16 %v62
  %v138 = vunpack.c.l.b16 %v63
  %v139 = vunpack.c.l.b16 %v64
  %v140 = vunpack.c.l.b16 %v65
  %v141 = vunpack.c.l.b16 %v66
  %v142 = vunpack.c.l.b16 %v67
  %v143 = vunpack.c.l.b16 %v68
  %v144 = vunpack.c.l.b16 %v69
  %v145 = vunpack.c.l.b16 %v70
  %v146 = vunpack.c.l.b16 %v71
  %v147 = vpack.c.b16 %v116, %v115
  %v148 = vpack.c.b16 %v118, %v117
  %v149 = vpack.c.b16 %v120, %v119
  %v150 = vpack.c.b16 %v122, %v121
  %v151 = vpack.c.b16 %v124, %v123
  %v152 = vpack.c.b16 %v126, %v125
  %v153 = vpack.c.b16 %v128, %v127
  %v154 = vpack.c.b16 %v130, %v129
  %v155 = vpack.c.b16 %v132, %v131
  %v156 = vpack.c.b16 %v134, %v133
  %v157 = vpack.c.b16 %v136, %v135
  %v158 = vpack.c.b16 %v138, %v137
  %v159 = vpack.c.b16 %v140, %v139
  %v160 = vpack.c.b16 %v142, %v141
  %v161 = vpack.c.b16 %v144, %v143
  %v162 = vpack.c.b16 %v146, %v145
  %179 = vmatpush.bf16.msra.mxu0 %v154
  %180 = vmatpush.bf16.msra.mxu0 %v153
  %181 = vmatpush.bf16.msra.mxu0 %v152
  %182 = vmatpush.bf16.msra.mxu0 %v151
  %183 = vmatpush.bf16.msra.mxu0 %v150
  %184 = vmatpush.bf16.msra.mxu0 %v149
  %185 = vmatpush.bf16.msra.mxu0 %v148
  %186 = vmatpush.bf16.msra.mxu0 %v147
  %187 = vmatmul.bf16.gmra.mxu0 %v79
  %v188 = vpop.f32.mrf.mxu0
  %v189 = vadd.f32 %v74, %v188
  %v190 = vpop.f32.mrf.mxu0
  %191 = vdwg.mxu0
  %192 = vmatpush.bf16.msra.mxu0 %v162
  %193 = vmatpush.bf16.msra.mxu0 %v161
  %194 = vmatpush.bf16.msra.mxu0 %v160
  %195 = vmatpush.bf16.msra.mxu0 %v159
  %196 = vmatpush.bf16.msra.mxu0 %v158
  %197 = vmatpush.bf16.msra.mxu0 %v157
  %198 = vmatpush.bf16.msra.mxu0 %v156
  %199 = vmatpush.bf16.msra.mxu0 %v155
  %200 = vmatmul.bf16.gmra.mxu0 %v80
  %v201 = vpop.f32.mrf.mxu0
  %v202 = vadd.f32 %v189, %v201
  %v203 = vpop.f32.mrf.mxu0
  %204 = vdwg.mxu0
  %v205 = vmax.f32 %v202, 0.0
  %v206 = vpack.c.bf16 %v205, %v205
  %v207 = vld [vmem:[%s6] sm:$0xf]
  %v208 = vld [vmem:[%s6 + $0x4] sm:$0xf]
  %v209 = vld [vmem:[%s6 + $0x8] sm:$0xf]
  %v210 = vld [vmem:[%s6 + $0xc] sm:$0xf]
  %v211 = vld [vmem:[%s1] sm:$0xff]
  %v212 = vpack.c.bf16 %v211, %v211
  %v213 = vld [vmem:[%s7] sm:$0xf]
  %v214 = vld [vmem:[%s7 + $0x4] sm:$0xf]
  %v215 = vld [vmem:[%s7 + $0x8] sm:$0xf]
  %v216 = vld [vmem:[%s7 + $0xc] sm:$0xf]
  %v221 = vunpack.c.l.b16 %v213
  %v222 = vunpack.c.l.b16 %v214
  %v223 = vunpack.c.l.b16 %v215
  %v224 = vunpack.c.l.b16 %v216
  %v225 = vpack.c.b16 %v222, %v221
  %v226 = vpack.c.b16 %v224, %v223
  %vm229 = vcmask 261120
  %v231 = vsel %vm229, %v212, 0
  %233 = vmatpush.bf16.msra.mxu0 0
  %234 = vmatpush.bf16.msra.mxu0 0
  %235 = vmatpush.bf16.msra.mxu0 0
  %236 = vmatpush.bf16.msra.mxu0 0
  %237 = vmatpush.bf16.msra.mxu0 0
  %238 = vmatpush.bf16.msra.mxu0 0
  %239 = vmatpush.bf16.msra.mxu0 %v226
  %240 = vmatpush.bf16.msra.mxu0 %v225
  %241 = vmatmul.bf16.gmra.mxu0 %v231
  %v242 = vpop.f32.mrf.mxu0
  %v243 = vadd.f32 0.0, %v242
  %v244 = vpop.f32.mrf.mxu0
  %245 = vdwg.mxu0
  %v250 = vunpack.c.l.b16 %v207
  %v251 = vunpack.c.l.b16 %v208
  %v252 = vunpack.c.l.b16 %v209
  %v253 = vunpack.c.l.b16 %v210
  %v254 = vpack.c.b16 %v251, %v250
  %v255 = vpack.c.b16 %v253, %v252
  %v259 = vsel %vm229, %v206, 0
  %261 = vmatpush.bf16.msra.mxu0 0
  %262 = vmatpush.bf16.msra.mxu0 0
  %263 = vmatpush.bf16.msra.mxu0 0
  %264 = vmatpush.bf16.msra.mxu0 0
  %265 = vmatpush.bf16.msra.mxu0 0
  %266 = vmatpush.bf16.msra.mxu0 0
  %267 = vmatpush.bf16.msra.mxu0 %v255
  %268 = vmatpush.bf16.msra.mxu0 %v254
  %269 = vmatmul.bf16.gmra.mxu0 %v259
  %v270 = vpop.f32.mrf.mxu0
  %v271 = vadd.f32 %v243, %v270
  %v272 = vpop.f32.mrf.mxu0
  %273 = vdwg.mxu0
  %v274 = vld [vmem:[%s8] sm:$0x1]
  %v276 = vperm.slane %v274, 0
  %v278 = vadd.f32 %v271, %v276
  %v279 = vxor.u32 %v278, 2147483648
  %v280 = vmul.f32 %v279, 1.442695
  %v281 = vpow.pop %v280
  %v282 = vadd.f32 %v281, 1.0
  %v283 = vrcp.pop %v282
  %v284 = vmul.f32 %v282, %v283
  %v285 = vsub.f32 1.0, %v284
  %v286 = vmul.f32 %v283, %v285
  %v287 = vadd.f32 %v283, %v286
  %vm288 = vweird.f32 %v282
  %vm289 = vweird.f32 %v283
  %vm290 = vmor %vm288, %vm289
  %v291 = vsel %vm290, %v283, %v287
  %v292 = vand.u32 2147483647, %v282
  %vm293 = vcmp.eq.f32.partialorder %v292, 8.507059e+37
  %v294 = vand.u32 %v282, 2147483648
  %v295 = vor.u32 1.1754944e-38, %v294
  %v296 = vsel %vm293, %v295, %v291
  %v297 = vmul.f32 1.0, %v296
  %v298 = vtanh.pop %v278
  %v299 = vld [vmem:[%s2] sm:$0xff]
  %301 = vrot.lane.b32.xlu0 %v299, 32
  %v302 = vpop.permute.xlu0 %301
  %v304 = vmul.f32 %v297, %v302
  %306 = vrot.lane.b32.xlu0 %v298, 64
  %v307 = vpop.permute.xlu0 %306
  %v309 = vmul.f32 %v297, %v307
  %311 = vrot.lane.b32.xlu0 %v309, 32
  %v312 = vpop.permute.xlu0 %311
  %v314 = vadd.f32 %v304, %v312
  %v315 = vtanh.pop %v314
  %317 = vrot.lane.b32.xlu0 %v315, 64
  %v318 = vpop.permute.xlu0 %317
  %v320 = vmul.f32 %v297, %v318
  %v321 = vpack.c.bf16 %v320, %v320
  %v322 = vld [vmem:[%s9] sm:$0xf]
  %v323 = vld [vmem:[%s9 + $0x4] sm:$0xf]
  %v324 = vld [vmem:[%s9 + $0x8] sm:$0xf]
  %v325 = vld [vmem:[%s9 + $0xc] sm:$0xf]
  %v326 = vld [vmem:[%s10] sm:$0x1]
  %v328 = vperm.slane %v326, 0
  %331 = vrot.lane.b32.xlu0 %v321, 32
  %v332 = vpop.permute.xlu0 %331
  %v337 = vunpack.c.l.b16 %v322
  %v338 = vunpack.c.l.b16 %v323
  %v339 = vunpack.c.l.b16 %v324
  %v340 = vunpack.c.l.b16 %v325
  %v341 = vpack.c.b16 %v338, %v337
  %v342 = vpack.c.b16 %v340, %v339
  %v346 = vsel %vm229, %v332, 0
  %348 = vmatpush.bf16.msra.mxu0 0
  %349 = vmatpush.bf16.msra.mxu0 0
  %350 = vmatpush.bf16.msra.mxu0 0
  %351 = vmatpush.bf16.msra.mxu0 0
  %352 = vmatpush.bf16.msra.mxu0 0
  %353 = vmatpush.bf16.msra.mxu0 0
  %354 = vmatpush.bf16.msra.mxu0 %v342
  %355 = vmatpush.bf16.msra.mxu0 %v341
  %356 = vmatmul.bf16.gmra.mxu0 %v346
  %v357 = vpop.f32.mrf.mxu0
  %v358 = vadd.f32 %v328, %v357
  %v359 = vpop.f32.mrf.mxu0
  %360 = vdwg.mxu0
  %v361 = vlaneseq
  %v362 = vand.u32 %v361, 127
  %vm363 = vcmp.lt.s32.totalorder %v362, 16
  %v364 = vsel %vm363, %v358, -1e+30
  %365 = vmax.xlane.f32.xlu0 %v364
  %v366 = vpop.xlane.xlu0 %365
  %v367 = vsub.f32 %v364, %v366
  %v368 = vmul.f32 %v367, 1.442695
  %v369 = vpow.pop %v368
  %v370 = vsel %vm363, %v369, 0.0
  %371 = vadd.xlane.f32.xlu0 %v370
  %v372 = vpop.xlane.xlu0 %371
  %v373 = vlog2.pop %v372
  %v374 = vmul.f32 %v373, 0.6931472
  %v375 = vsub.f32 %v367, %v374
  %v376 = vrcp.pop %v372
  %v377 = vmul.f32 %v372, %v376
  %v378 = vsub.f32 1.0, %v377
  %v379 = vmul.f32 %v376, %v378
  %v380 = vadd.f32 %v376, %v379
  %vm381 = vweird.f32 %v372
  %vm382 = vweird.f32 %v376
  %vm383 = vmor %vm381, %vm382
  %v384 = vsel %vm383, %v376, %v380
  %v385 = vand.u32 2147483647, %v372
  %vm386 = vcmp.eq.f32.partialorder %v385, 8.507059e+37
  %v387 = vand.u32 %v372, 2147483648
  %v388 = vor.u32 1.1754944e-38, %v387
  %v389 = vsel %vm386, %v388, %v384
  %v390 = vmul.f32 %v369, %v389
  %v391 = vmul.f32 %v390, %v375
  %v392 = vsel %vm363, %v391, 0.0
  %393 = vadd.xlane.f32.xlu0 %v392
  %v394 = vpop.xlane.xlu0 %393
  %v395 = vsub.f32 0.0, %v394
  %v396 = vld [vmem:[%s3] sm:$0xff]
  %v397 = vadd.f32 %v358, %v396
  %v398 = vsel %vm363, %v397, -1e+30
  %399 = vmax.xlane.f32.xlu0 %v398
  %v400 = vpop.xlane.xlu0 %399
  %vm401 = vcmp.ge.f32.partialorder %v398, %v400
  %v402 = vsel %vm401, %v362, 128
  %v403 = vand.u32 %v402, 65535
  %v404 = vshra.s32 %v402, 16
  %v405 = vcvt.s32.f32 %v403
  %v406 = vcvt.s32.f32 %v404
  %407 = vmin.xlane.f32.xlu0 %v406
  %v408 = vpop.xlane.xlu0 %407
  %vm409 = vcmp.eq.f32.partialorder %v406, %v408
  %v410 = vsel %vm409, %v405, inf
  %411 = vmin.xlane.f32.xlu0 %v410
  %v412 = vpop.xlane.xlu0 %411
  %v413 = vcvt.f32.s32 %v412
  %v414 = vcvt.f32.s32 %v408
  %v415 = vshll.u32 %v414, 16
  %v416 = vadd.s32 %v415, %v413
  %vm417 = vcmp.eq.s32.totalorder %v362, %v416
  %v418 = vsel %vm417, %v375, 0.0
  %419 = vadd.xlane.f32.xlu0 %v418
  %v420 = vpop.xlane.xlu0 %419
  %vm421 = vcmp.eq.s32.totalorder %v362, 17
  %v422 = vsel %vm421, %v420, %v358
  %vm423 = vcmp.eq.s32.totalorder %v362, 18
  %v424 = vsel %vm423, %v395, %v422
  %vm425 = vcmp.eq.s32.totalorder %v362, 19
  %v426 = vcvt.s32.f32 %v416
  %v427 = vsel %vm425, %v426, %v424
  %428 = vst [vmem:[%s11] sm:$0xff] %v427
  %430 = vrot.lane.b32.xlu0 %v320, 64
  %v431 = vpop.permute.xlu0 %430
  %vm433 = vcmask 523520
  %434 = vst.msk [vmem:[%s11] sm:$0xff] %vm433, %v431
  %436 = vrot.lane.b32.xlu0 %v314, 32
  %v437 = vpop.permute.xlu0 %436
  %vm439 = vcmask 785920
  %440 = vst.msk [vmem:[%s11] sm:$0xff] %vm439, %v437
  // Predicated region
  $region46: #{pytorch_agent_forward.1} parent=0 // pred_check
    _
  $region47: #{pytorch_agent_forward.1} parent=0 // pred_check_branch
    %442 = sbr.rel (0) target = $region49
  $region48: #{pytorch_agent_forward.1} parent=0 // pred_region
    _
  $region49: #{pytorch_agent_forward.1} parent=0 // pred_fallthru
    _
  // Predicated region
  $region50: #{pytorch_agent_forward.1} parent=0 // pred_check
    _
  $region51: #{pytorch_agent_forward.1} parent=0 // pred_check_branch
    %444 = sbr.rel (0) target = $region53
  $region52: #{pytorch_agent_forward.1} parent=0 // pred_region
    _
  $region53: #{pytorch_agent_forward.1} parent=0 // pred_fallthru
    _

</llo_original>
